<compile_context>
chip_gen: v5e
topology: v5e:2x2
jax: 0.10.0
libtpu: 0.0.40
codegen_flags: <defaults>
</compile_context>

<pallas_src>
import jax
import jax.numpy as jnp
from jax import lax
from jax.experimental import pallas as pl
from jax.experimental.pallas import tpu as pltpu

INPUT_SIZE = 32
OUTPUT_SIZE = 16
H1, H2, H3 = 256, 128, 64
LANE = 128


def _round_up(n, m):
    return (n + m - 1) // m * m


def _cdiv(a, b):
    return (a + b - 1) // b


def _prelu(x, a):
    # PReLU with a single learned slope `a` (PyTorch default num_parameters=1)
    return jnp.where(x > 0, x, a * x)


def mlp_kernel(slopes_ref,                      # (3,) f32 in SMEM: PReLU slopes
               x_ref,                           # (tile_m, INPUT_SIZE) f32
               w1_ref, b1_ref,                  # (256,32) bf16, (256,1) f32
               w2_ref, b2_ref,                  # (128,256) bf16, (128,1) f32
               w3_ref, b3_ref,                  # (64,128) bf16, (64,1) f32
               w4_ref, b4_ref,                  # (16,64)  bf16, (16,1)  f32
               out_ref):                        # (OUTPUT_SIZE, tile_m) f32  (transposed)
    a1 = slopes_ref[0]
    a2 = slopes_ref[1]
    a3 = slopes_ref[2]

    cdt = w1_ref.dtype                          # matmul operand dtype (bfloat16)
    x = x_ref[...].astype(cdt)                  # cast in-kernel (no wrapper pass over x)

    # Layer 1: h1^T = W1 @ x^T  -> (256, tm).  Contract last dims of both operands
    # (same pattern as q @ k^T), so x never needs an explicit transpose.
    h = lax.dot_general(w1_ref[...], x, (((1,), (1,)), ((), ())),
                        preferred_element_type=jnp.float32)
    h = _prelu(h + b1_ref[...], a1).astype(cdt)     # Dropout = identity in eval

    # Layer 2: (128,256) @ (256,tm) -> (128,tm)
    h = jnp.dot(w2_ref[...], h, preferred_element_type=jnp.float32)
    h = _prelu(h + b2_ref[...], a2).astype(cdt)     # Dropout = identity in eval

    # Layer 3: (64,128) @ (128,tm) -> (64,tm)
    h = jnp.dot(w3_ref[...], h, preferred_element_type=jnp.float32)
    h = _prelu(h + b3_ref[...], a3).astype(cdt)

    # Layer 4 + Tanh on the 16 real output rows only: (16,64) @ (64,tm) -> (16,tm)
    h = jnp.dot(w4_ref[...], h, preferred_element_type=jnp.float32) + b4_ref[...]
    out_ref[...] = jnp.tanh(h).astype(out_ref.dtype)


def _choose_tiling(B, max_tile_m=1024):
    """Return (padded_batch, tile_m).  tile_m divides padded_batch.

    Small batches: one full-extent tile.  Larger batches: tile is a multiple of 128
    (lane-dense output stores) and the grid has >= 2 steps (v7x megacore), with
    padding bounded by one tile instead of a fixed large tile.
    """
    B8 = _round_up(B, 8)
    if B8 <= 256:
        return B8, B8                       # single tile, block == full array
    max_k = max(1, max_tile_m // LANE)
    n = _cdiv(B8, LANE)                     # number of 128-row chunks (>= 3 here)
    k = min(max_k, max(1, n // 2))          # chunks per tile -> at least 2 grid steps
    tm = LANE * k
    Bp = _cdiv(B8, tm) * tm
    return Bp, tm


def prepare_params(params, compute_dtype=jnp.bfloat16):
    """One-time conversion of f32 PyTorch-layout params to kernel operands.

    Weights stay in their native (out, in) layout (that is exactly what the
    transposed pipeline needs), cast to bf16.  Biases become f32 column vectors.
    PReLU slopes are packed into one (3,) f32 array for the SMEM scalar path.
    """
    (w1, b1, a1, w2, b2, a2, w3, b3, a3, w4, b4) = params
    slopes = jnp.stack([a1, a2, a3]).astype(jnp.float32).reshape(3)
    ws = tuple(w.astype(compute_dtype) for w in (w1, w2, w3, w4))
    bs = tuple(b.astype(jnp.float32).reshape(-1, 1) for b in (b1, b2, b3, b4))
    return (slopes, ws, bs)


def mlp_forward(x, prep, *, max_tile_m=1024):
    """x: [B, input_size] float32 -> [B, output_size] float32."""
    slopes, (w1, w2, w3, w4), (b1, b2, b3, b4) = prep
    B, D = x.shape
    out_dim = w4.shape[0]

    Bp, tm = _choose_tiling(B, max_tile_m)
    xp = x if Bp == B else jnp.pad(x, ((0, Bp - B), (0, 0)))
    grid = (Bp // tm,)

    # Grid-invariant blocks (constant index_map -> Mosaic skips re-DMA across steps).
    def full(arr):
        return pl.BlockSpec(arr.shape, lambda i: (0, 0))

    smem_spec = pl.BlockSpec(memory_space=pltpu.MemorySpace.SMEM)

    weight_bytes = sum(int(a.size) * a.dtype.itemsize
                       for a in (w1, w2, w3, w4, b1, b2, b3, b4))
    flops = 2 * Bp * sum(int(w.shape[0]) * int(w.shape[1]) for w in (w1, w2, w3, w4))
    bytes_accessed = (int(xp.size) * xp.dtype.itemsize      # x read
                      + out_dim * Bp * 4                    # lane-dense f32 output
                      + weight_bytes)

    out_t = pl.pallas_call(
        mlp_kernel,
        out_shape=jax.ShapeDtypeStruct((out_dim, Bp), jnp.float32),
        grid_spec=pltpu.PrefetchScalarGridSpec(
            num_scalar_prefetch=0,
            grid=grid,
            in_specs=[
                smem_spec,                                    # PReLU slopes (SMEM)
                pl.BlockSpec((tm, D), lambda i: (i, 0)),      # x batch tile
                full(w1), full(b1),
                full(w2), full(b2),
                full(w3), full(b3),
                full(w4), full(b4),
            ],
            out_specs=pl.BlockSpec((out_dim, tm), lambda i: (0, i)),
        ),
        compiler_params=pltpu.CompilerParams(
            dimension_semantics=("parallel",)),
        cost_estimate=pl.CostEstimate(
            flops=flops,
            transcendentals=Bp * out_dim,
            bytes_accessed=bytes_accessed),
    )(slopes, xp, w1, b1, w2, b2, w3, b3, w4, b4)

    # Tiny (out_dim x B) transpose back to the PyTorch (B, out_dim) layout.
    return out_t[:, :B].T


def init_params(key):
    """Parameter init matching the PyTorch module.

    Linear weight (out, in) and bias (out,) ~ U(-1/sqrt(fan_in), 1/sqrt(fan_in))
    (PyTorch default); PReLU slope = 0.25 (PyTorch default, num_parameters=1).
    """
    dims = [(INPUT_SIZE, H1), (H1, H2), (H2, H3), (H3, OUTPUT_SIZE)]
    keys = jax.random.split(key, 2 * len(dims))
    params = []
    for li, (din, dout) in enumerate(dims):
        bound = 1.0 / (din ** 0.5)
        w = jax.random.uniform(keys[2 * li], (dout, din), jnp.float32, -bound, bound)
        b = jax.random.uniform(keys[2 * li + 1], (dout,), jnp.float32, -bound, bound)
        params.append(w)
        params.append(b)
        if li < 3:  # PReLU after the first three linears
            params.append(jnp.float32(0.25))
    return tuple(params)  # (w1,b1,a1, w2,b2,a2, w3,b3,a3, w4,b4)


def mlp_reference(x, params, compute_dtype=jnp.bfloat16):
    """Pure-JAX reference using the same bf16-operand / f32-accumulate policy."""
    (w1, b1, a1, w2, b2, a2, w3, b3, a3, w4, b4) = params

    def lin(h, w, b):
        return lax.dot_general(h.astype(compute_dtype), w.astype(compute_dtype),
                               (((1,), (1,)), ((), ())),
                               preferred_element_type=jnp.float32) + b

    h = _prelu(lin(x, w1, b1), a1)
    h = _prelu(lin(h, w2, b2), a2)
    h = _prelu(lin(h, w3, b3), a3)
    return jnp.tanh(lin(h, w4, b4))


if __name__ == "__main__":
    key = jax.random.PRNGKey(0)
    pkey, xkey = jax.random.split(key)
    params = init_params(pkey)
    prep = prepare_params(params)           # one-time bf16 cast / bias reshape
    fwd = jax.jit(mlp_forward)

    # 16: single-tile path; 13: batch padded to sublane multiple;
    # 300: multi-step grid (>=2 steps for v7x megacore) + batch padding path.
    for batch in (16, 13, 300):
        x = jax.random.normal(jax.random.fold_in(xkey, batch),
                              (batch, INPUT_SIZE), jnp.float32)
        out = jax.block_until_ready(fwd(x, prep))
        ref = mlp_reference(x, params)
        assert out.shape == (batch, OUTPUT_SIZE)
        assert jnp.allclose(out, ref, atol=2e-3, rtol=2e-3), \
            f"mismatch vs reference (batch={batch})"

    print("KERNEL_OK")
</pallas_src>

<mosaic_0001>
module attributes {stable_mosaic.version = 11 : i64} {
  func.func @mlp_kernel(%arg0: i32, %arg1: memref<3xf32, #tpu.memory_space<smem>>, %arg2: memref<16x32xf32, #tpu.memory_space<vmem>>, %arg3: memref<256x32xbf16, #tpu.memory_space<vmem>>, %arg4: memref<256x1xf32, #tpu.memory_space<vmem>>, %arg5: memref<128x256xbf16, #tpu.memory_space<vmem>>, %arg6: memref<128x1xf32, #tpu.memory_space<vmem>>, %arg7: memref<64x128xbf16, #tpu.memory_space<vmem>>, %arg8: memref<64x1xf32, #tpu.memory_space<vmem>>, %arg9: memref<16x64xbf16, #tpu.memory_space<vmem>>, %arg10: memref<16x1xf32, #tpu.memory_space<vmem>>, %arg11: memref<16x16xf32, #tpu.memory_space<vmem>>) attributes {dimension_semantics = [#tpu.dimension_semantics<parallel>], iteration_bounds = array<i64: 1>, scalar_prefetch = 0 : i64, scratch_operands = 0 : i64, tpu.core_type = #tpu.core_type<tc>, window_params = [{transform_indices = @transform_0, window_bounds = array<i64: 3>}, {transform_indices = @transform_1, window_bounds = array<i64: 16, 32>}, {pipeline_mode = #tpu.pipeline_mode<synchronous>, transform_indices = @transform_2, window_bounds = array<i64: 256, 32>}, {pipeline_mode = #tpu.pipeline_mode<synchronous>, transform_indices = @transform_3, window_bounds = array<i64: 256, 1>}, {pipeline_mode = #tpu.pipeline_mode<synchronous>, transform_indices = @transform_4, window_bounds = array<i64: 128, 256>}, {pipeline_mode = #tpu.pipeline_mode<synchronous>, transform_indices = @transform_5, window_bounds = array<i64: 128, 1>}, {pipeline_mode = #tpu.pipeline_mode<synchronous>, transform_indices = @transform_6, window_bounds = array<i64: 64, 128>}, {pipeline_mode = #tpu.pipeline_mode<synchronous>, transform_indices = @transform_7, window_bounds = array<i64: 64, 1>}, {pipeline_mode = #tpu.pipeline_mode<synchronous>, transform_indices = @transform_8, window_bounds = array<i64: 16, 64>}, {pipeline_mode = #tpu.pipeline_mode<synchronous>, transform_indices = @transform_9, window_bounds = array<i64: 16, 1>}, {transform_indices = @transform_10, window_bounds = array<i64: 16, 16>}]} {
    %c0 = arith.constant 0 : index
    %0 = memref.load %arg1[%c0] : memref<3xf32, #tpu.memory_space<smem>>
    %c1 = arith.constant 1 : index
    %1 = memref.load %arg1[%c1] : memref<3xf32, #tpu.memory_space<smem>>
    %c2 = arith.constant 2 : index
    %2 = memref.load %arg1[%c2] : memref<3xf32, #tpu.memory_space<smem>>
    %c0_0 = arith.constant 0 : index
    %c0_1 = arith.constant 0 : index
    %3 = vector.load %arg2[%c0_0, %c0_1] : memref<16x32xf32, #tpu.memory_space<vmem>>, vector<16x32xf32>
    %4 = arith.truncf %3 : vector<16x32xf32> to vector<16x32xbf16>
    %c0_2 = arith.constant 0 : index
    %c0_3 = arith.constant 0 : index
    %5 = vector.load %arg3[%c0_2, %c0_3] : memref<256x32xbf16, #tpu.memory_space<vmem>>, vector<256x32xbf16>
    %cst = arith.constant dense<0.000000e+00> : vector<256x16xf32>
    %6 = tpu.matmul %5, %4, %cst {dimension_numbers = #tpu.dot_dimension_numbers<[1], [1], [0], [0], [0, 0, 1, 0], [], []>} : vector<256x32xbf16>, vector<16x32xbf16>, vector<256x16xf32> -> vector<256x16xf32>
    %c0_4 = arith.constant 0 : index
    %c0_5 = arith.constant 0 : index
    %7 = vector.load %arg4[%c0_4, %c0_5] : memref<256x1xf32, #tpu.memory_space<vmem>>, vector<256x1xf32>
    %8 = vector.broadcast %7 : vector<256x1xf32> to vector<256x16xf32>
    %9 = arith.addf %6, %8 : vector<256x16xf32>
    %cst_6 = arith.constant 0.000000e+00 : f32
    %10 = vector.broadcast %cst_6 : f32 to vector<256x16xf32>
    %11 = arith.cmpf ogt, %9, %10 : vector<256x16xf32>
    %12 = vector.broadcast %0 : f32 to vector<256x16xf32>
    %13 = arith.mulf %12, %9 : vector<256x16xf32>
    %14 = arith.select %11, %9, %13 : vector<256x16xi1>, vector<256x16xf32>
    %15 = arith.truncf %14 : vector<256x16xf32> to vector<256x16xbf16>
    %c0_7 = arith.constant 0 : index
    %c0_8 = arith.constant 0 : index
    %16 = vector.load %arg5[%c0_7, %c0_8] : memref<128x256xbf16, #tpu.memory_space<vmem>>, vector<128x256xbf16>
    %cst_9 = arith.constant dense<0.000000e+00> : vector<128x16xf32>
    %17 = tpu.matmul %16, %15, %cst_9 {dimension_numbers = #tpu.dot_dimension_numbers<[1], [0], [0], [1], [0, 0, 1, 1], [], []>} : vector<128x256xbf16>, vector<256x16xbf16>, vector<128x16xf32> -> vector<128x16xf32>
    %c0_10 = arith.constant 0 : index
    %c0_11 = arith.constant 0 : index
    %18 = vector.load %arg6[%c0_10, %c0_11] : memref<128x1xf32, #tpu.memory_space<vmem>>, vector<128x1xf32>
    %19 = vector.broadcast %18 : vector<128x1xf32> to vector<128x16xf32>
    %20 = arith.addf %17, %19 : vector<128x16xf32>
    %cst_12 = arith.constant 0.000000e+00 : f32
    %21 = vector.broadcast %cst_12 : f32 to vector<128x16xf32>
    %22 = arith.cmpf ogt, %20, %21 : vector<128x16xf32>
    %23 = vector.broadcast %1 : f32 to vector<128x16xf32>
    %24 = arith.mulf %23, %20 : vector<128x16xf32>
    %25 = arith.select %22, %20, %24 : vector<128x16xi1>, vector<128x16xf32>
    %26 = arith.truncf %25 : vector<128x16xf32> to vector<128x16xbf16>
    %c0_13 = arith.constant 0 : index
    %c0_14 = arith.constant 0 : index
    %27 = vector.load %arg7[%c0_13, %c0_14] : memref<64x128xbf16, #tpu.memory_space<vmem>>, vector<64x128xbf16>
    %cst_15 = arith.constant dense<0.000000e+00> : vector<64x16xf32>
    %28 = tpu.matmul %27, %26, %cst_15 {dimension_numbers = #tpu.dot_dimension_numbers<[1], [0], [0], [1], [0, 0, 1, 1], [], []>} : vector<64x128xbf16>, vector<128x16xbf16>, vector<64x16xf32> -> vector<64x16xf32>
    %c0_16 = arith.constant 0 : index
    %c0_17 = arith.constant 0 : index
    %29 = vector.load %arg8[%c0_16, %c0_17] : memref<64x1xf32, #tpu.memory_space<vmem>>, vector<64x1xf32>
    %30 = vector.broadcast %29 : vector<64x1xf32> to vector<64x16xf32>
    %31 = arith.addf %28, %30 : vector<64x16xf32>
    %cst_18 = arith.constant 0.000000e+00 : f32
    %32 = vector.broadcast %cst_18 : f32 to vector<64x16xf32>
    %33 = arith.cmpf ogt, %31, %32 : vector<64x16xf32>
    %34 = vector.broadcast %2 : f32 to vector<64x16xf32>
    %35 = arith.mulf %34, %31 : vector<64x16xf32>
    %36 = arith.select %33, %31, %35 : vector<64x16xi1>, vector<64x16xf32>
    %37 = arith.truncf %36 : vector<64x16xf32> to vector<64x16xbf16>
    %c0_19 = arith.constant 0 : index
    %c0_20 = arith.constant 0 : index
    %38 = vector.load %arg9[%c0_19, %c0_20] : memref<16x64xbf16, #tpu.memory_space<vmem>>, vector<16x64xbf16>
    %cst_21 = arith.constant dense<0.000000e+00> : vector<16x16xf32>
    %39 = tpu.matmul %38, %37, %cst_21 {dimension_numbers = #tpu.dot_dimension_numbers<[1], [0], [0], [1], [0, 0, 1, 1], [], []>} : vector<16x64xbf16>, vector<64x16xbf16>, vector<16x16xf32> -> vector<16x16xf32>
    %c0_22 = arith.constant 0 : index
    %c0_23 = arith.constant 0 : index
    %40 = vector.load %arg10[%c0_22, %c0_23] : memref<16x1xf32, #tpu.memory_space<vmem>>, vector<16x1xf32>
    %41 = vector.broadcast %40 : vector<16x1xf32> to vector<16x16xf32>
    %42 = arith.addf %39, %41 : vector<16x16xf32>
    %43 = math.tanh %42 : vector<16x16xf32>
    %c0_24 = arith.constant 0 : index
    %c0_25 = arith.constant 0 : index
    %44 = vector.load %arg11[%c0_24, %c0_25] : memref<16x16xf32, #tpu.memory_space<vmem>>, vector<16x16xf32>
    tpu.vector_store %arg11[%c0_24, %c0_25], %43 {strides = array<i32>} : memref<16x16xf32, #tpu.memory_space<vmem>>, vector<16x16xf32>,
    return
  }
  func.func @transform_0(%arg0: i32) -> i32 {
    %c0_i32 = arith.constant 0 : i32
    %c0_i32_0 = arith.constant 0 : i32
    return %c0_i32 : i32
  }
  func.func @transform_1(%arg0: i32) -> (i32, i32) {
    %c0_i32 = arith.constant 0 : i32
    %c0_i32_0 = arith.constant 0 : i32
    return %arg0, %c0_i32 : i32, i32
  }
  func.func @transform_2(%arg0: i32) -> (i32, i32) {
    %c0_i32 = arith.constant 0 : i32
    %c0_i32_0 = arith.constant 0 : i32
    %c0_i32_1 = arith.constant 0 : i32
    return %c0_i32, %c0_i32_0 : i32, i32
  }
  func.func @transform_3(%arg0: i32) -> (i32, i32) {
    %c0_i32 = arith.constant 0 : i32
    %c0_i32_0 = arith.constant 0 : i32
    %c0_i32_1 = arith.constant 0 : i32
    return %c0_i32, %c0_i32_0 : i32, i32
  }
  func.func @transform_4(%arg0: i32) -> (i32, i32) {
    %c0_i32 = arith.constant 0 : i32
    %c0_i32_0 = arith.constant 0 : i32
    %c0_i32_1 = arith.constant 0 : i32
    return %c0_i32, %c0_i32_0 : i32, i32
  }
  func.func @transform_5(%arg0: i32) -> (i32, i32) {
    %c0_i32 = arith.constant 0 : i32
    %c0_i32_0 = arith.constant 0 : i32
    %c0_i32_1 = arith.constant 0 : i32
    return %c0_i32, %c0_i32_0 : i32, i32
  }
  func.func @transform_6(%arg0: i32) -> (i32, i32) {
    %c0_i32 = arith.constant 0 : i32
    %c0_i32_0 = arith.constant 0 : i32
    %c0_i32_1 = arith.constant 0 : i32
    return %c0_i32, %c0_i32_0 : i32, i32
  }
  func.func @transform_7(%arg0: i32) -> (i32, i32) {
    %c0_i32 = arith.constant 0 : i32
    %c0_i32_0 = arith.constant 0 : i32
    %c0_i32_1 = arith.constant 0 : i32
    return %c0_i32, %c0_i32_0 : i32, i32
  }
  func.func @transform_8(%arg0: i32) -> (i32, i32) {
    %c0_i32 = arith.constant 0 : i32
    %c0_i32_0 = arith.constant 0 : i32
    %c0_i32_1 = arith.constant 0 : i32
    return %c0_i32, %c0_i32_0 : i32, i32
  }
  func.func @transform_9(%arg0: i32) -> (i32, i32) {
    %c0_i32 = arith.constant 0 : i32
    %c0_i32_0 = arith.constant 0 : i32
    %c0_i32_1 = arith.constant 0 : i32
    return %c0_i32, %c0_i32_0 : i32, i32
  }
  func.func @transform_10(%arg0: i32) -> (i32, i32) {
    %c0_i32 = arith.constant 0 : i32
    %c0_i32_0 = arith.constant 0 : i32
    return %c0_i32, %arg0 : i32, i32
  }
}

</mosaic_0001>

<llo_original>
// kernel: mlp_forward.1
$region0: #{mlp_forward.1}
  #allocation0 [shape = 'u32[]', space=smem, size = 0x4, offset = 0x4, fixed_abs, tag = 'smem constant byte address 0x4 - core index']
  #allocation1 [shape = 'u32[72,128]{1,0:T(1,128)}', space=vmem, size = 0x9000, scoped, tag = 'internal scratch']
  %s0 = inlined_call_operand.vmem [shape: f32[3], index: 0, kind: input, shape index: {}]
  %s1 = inlined_call_operand.vmem [shape: f32[16,32], index: 1, kind: input, shape index: {}]
  %s2 = inlined_call_operand.vmem [shape: bf16[256,32], index: 2, kind: input, shape index: {}]
  %s3 = inlined_call_operand.vmem [shape: f32[256,1], index: 3, kind: input, shape index: {}]
  %s4 = inlined_call_operand.vmem [shape: bf16[128,256], index: 4, kind: input, shape index: {}]
  %s5 = inlined_call_operand.vmem [shape: f32[128,1], index: 5, kind: input, shape index: {}]
  %s6 = inlined_call_operand.vmem [shape: bf16[64,128], index: 6, kind: input, shape index: {}]
  %s7 = inlined_call_operand.vmem [shape: f32[64,1], index: 7, kind: input, shape index: {}]
  %s8 = inlined_call_operand.vmem [shape: bf16[16,64], index: 8, kind: input, shape index: {}]
  %s9 = inlined_call_operand.vmem [shape: f32[16,1], index: 9, kind: input, shape index: {}]
  %s10 = inlined_call_operand.vmem [shape: f32[16,16], index: 10, kind: output, shape index: {}]
  %s11 = sld [smem:[#allocation0]]
  $region54: #{mlp_forward.1} parent=0
    _
  %s13 = ssub.s32 1, %s11
  %s14 = scalar_select 0, %s13, %s11
  $region1: #{mlp_forward.1} parent=0
    #allocation2 [shape = 'u8[512]{0}', space=smem, size = 0x200, scoped, tag = 'input window, operand 0, single buffered']
    #allocation3 [shape = 's32[1]{0}', space=sflag, size = 0x4, scoped, tag = 'scoped memory for mlp_forward.1']
    %15 = vsyncpa [#allocation3], 0
    // Predicated region
    $region2: #{mlp_forward.1} parent=1 // pred_check
      _
    $region3: #{mlp_forward.1} parent=1 // pred_check_branch
      %17 = sbr.rel (0) target = $region5
    $region4: #{mlp_forward.1} parent=1 // pred_region
      %19 = vsyncadd [#allocation3], 0
      %s21 = sshll.u32 %s0, 4
      %s22 = int_to_ptr.vmem [resolvable:$true] %s21
      %24 = dma.vmem_to_smem %s22, 16, [#allocation2], [#allocation3]
    $region5: #{mlp_forward.1} parent=1 // pred_fallthru
      _
    // Predicated region
    $region6: #{mlp_forward.1} parent=1 // pred_check
      _
    $region7: #{mlp_forward.1} parent=1 // pred_check_branch
      %26 = sbr.rel (0) target = $region9
    $region8: #{mlp_forward.1} parent=1 // pred_region
      _
    $region9: #{mlp_forward.1} parent=1 // pred_fallthru
      _
    // Predicated region
    $region10: #{mlp_forward.1} parent=1 // pred_check
      _
    $region11: #{mlp_forward.1} parent=1 // pred_check_branch
      %28 = sbr.rel (0) target = $region13
    $region12: #{mlp_forward.1} parent=1 // pred_region
      _
    $region13: #{mlp_forward.1} parent=1 // pred_fallthru
      _
    // Predicated region
    $region14: #{mlp_forward.1} parent=1 // pred_check
      _
    $region15: #{mlp_forward.1} parent=1 // pred_check_branch
      %30 = sbr.rel (0) target = $region17
    $region16: #{mlp_forward.1} parent=1 // pred_region
      _
    $region17: #{mlp_forward.1} parent=1 // pred_fallthru
      _
    // Predicated region
    $region18: #{mlp_forward.1} parent=1 // pred_check
      _
    $region19: #{mlp_forward.1} parent=1 // pred_check_branch
      %32 = sbr.rel (0) target = $region21
    $region20: #{mlp_forward.1} parent=1 // pred_region
      _
    $region21: #{mlp_forward.1} parent=1 // pred_fallthru
      _
    // Predicated region
    $region22: #{mlp_forward.1} parent=1 // pred_check
      _
    $region23: #{mlp_forward.1} parent=1 // pred_check_branch
      %34 = sbr.rel (0) target = $region25
    $region24: #{mlp_forward.1} parent=1 // pred_region
      _
    $region25: #{mlp_forward.1} parent=1 // pred_fallthru
      _
    // Predicated region
    $region26: #{mlp_forward.1} parent=1 // pred_check
      _
    $region27: #{mlp_forward.1} parent=1 // pred_check_branch
      %36 = sbr.rel (0) target = $region29
    $region28: #{mlp_forward.1} parent=1 // pred_region
      _
    $region29: #{mlp_forward.1} parent=1 // pred_fallthru
      _
    // Predicated region
    $region30: #{mlp_forward.1} parent=1 // pred_check
      _
    $region31: #{mlp_forward.1} parent=1 // pred_check_branch
      %38 = sbr.rel (0) target = $region33
    $region32: #{mlp_forward.1} parent=1 // pred_region
      _
    $region33: #{mlp_forward.1} parent=1 // pred_fallthru
      _
    // Predicated region
    $region34: #{mlp_forward.1} parent=1 // pred_check
      _
    $region35: #{mlp_forward.1} parent=1 // pred_check_branch
      %40 = sbr.rel (0) target = $region37
    $region36: #{mlp_forward.1} parent=1 // pred_region
      _
    $region37: #{mlp_forward.1} parent=1 // pred_fallthru
      _
    // Predicated region
    $region38: #{mlp_forward.1} parent=1 // pred_check
      _
    $region39: #{mlp_forward.1} parent=1 // pred_check_branch
      %42 = sbr.rel (0) target = $region41
    $region40: #{mlp_forward.1} parent=1 // pred_region
      _
    $region41: #{mlp_forward.1} parent=1 // pred_fallthru
      _
    // Predicated region
    $region42: #{mlp_forward.1} parent=1 // pred_check
      _
    $region43: #{mlp_forward.1} parent=1 // pred_check_branch
      %44 = sbr.rel (0) target = $region45
    $region44: #{mlp_forward.1} parent=1 // pred_region
      %46 = dma.done [#allocation3], 16
    $region45: #{mlp_forward.1} parent=1 // pred_fallthru
      _
    %47 = sfence
    %s49 = sld [smem:[#allocation2]]
    %s50 = sld [smem:[#allocation2 + $0x1]]
    %s51 = sld [smem:[#allocation2 + $0x2]]
    %v52 = vld [vmem:[%s1] sm:$0xff]
    %v53 = vld [vmem:[%s1 + $0x8] sm:$0xff]
    %v54 = vpack.c.bf16 %v53, %v52
    %v55 = vld [vmem:[%s2] sm:$0xf]
    %v56 = vld [vmem:[%s2 + $0x4] sm:$0xf]
    %v57 = vld [vmem:[%s2 + $0x8] sm:$0xf]
    %v58 = vld [vmem:[%s2 + $0xc] sm:$0xf]
    %v59 = vld [vmem:[%s2 + $0x10] sm:$0xf]
    %v60 = vld [vmem:[%s2 + $0x14] sm:$0xf]
    %v61 = vld [vmem:[%s2 + $0x18] sm:$0xf]
    %v62 = vld [vmem:[%s2 + $0x1c] sm:$0xf]
    %v63 = vld [vmem:[%s2 + $0x20] sm:$0xf]
    %v64 = vld [vmem:[%s2 + $0x24] sm:$0xf]
    %v65 = vld [vmem:[%s2 + $0x28] sm:$0xf]
    %v66 = vld [vmem:[%s2 + $0x2c] sm:$0xf]
    %v67 = vld [vmem:[%s2 + $0x30] sm:$0xf]
    %v68 = vld [vmem:[%s2 + $0x34] sm:$0xf]
    %v69 = vld [vmem:[%s2 + $0x38] sm:$0xf]
    %v70 = vld [vmem:[%s2 + $0x3c] sm:$0xf]
    %v71 = vld [vmem:[%s2 + $0x40] sm:$0xf]
    %v72 = vld [vmem:[%s2 + $0x44] sm:$0xf]
    %v73 = vld [vmem:[%s2 + $0x48] sm:$0xf]
    %v74 = vld [vmem:[%s2 + $0x4c] sm:$0xf]
    %v75 = vld [vmem:[%s2 + $0x50] sm:$0xf]
    %v76 = vld [vmem:[%s2 + $0x54] sm:$0xf]
    %v77 = vld [vmem:[%s2 + $0x58] sm:$0xf]
    %v78 = vld [vmem:[%s2 + $0x5c] sm:$0xf]
    %v79 = vld [vmem:[%s2 + $0x60] sm:$0xf]
    %v80 = vld [vmem:[%s2 + $0x64] sm:$0xf]
    %v81 = vld [vmem:[%s2 + $0x68] sm:$0xf]
    %v82 = vld [vmem:[%s2 + $0x6c] sm:$0xf]
    %v83 = vld [vmem:[%s2 + $0x70] sm:$0xf]
    %v84 = vld [vmem:[%s2 + $0x74] sm:$0xf]
    %v85 = vld [vmem:[%s2 + $0x78] sm:$0xf]
    %v86 = vld [vmem:[%s2 + $0x7c] sm:$0xf]
    %v87 = vld [vmem:[%s3] sm:$0xff]
    %v88 = vld [vmem:[%s3 + $0x8] sm:$0xff]
    %v89 = vld [vmem:[%s3 + $0x10] sm:$0xff]
    %v90 = vld [vmem:[%s3 + $0x18] sm:$0xff]
    %v91 = vld [vmem:[%s3 + $0x20] sm:$0xff]
    %v92 = vld [vmem:[%s3 + $0x28] sm:$0xff]
    %v93 = vld [vmem:[%s3 + $0x30] sm:$0xff]
    %v94 = vld [vmem:[%s3 + $0x38] sm:$0xff]
    %v95 = vld [vmem:[%s3 + $0x40] sm:$0xff]
    %v96 = vld [vmem:[%s3 + $0x48] sm:$0xff]
    %v97 = vld [vmem:[%s3 + $0x50] sm:$0xff]
    %v98 = vld [vmem:[%s3 + $0x58] sm:$0xff]
    %v99 = vld [vmem:[%s3 + $0x60] sm:$0xff]
    %v100 = vld [vmem:[%s3 + $0x68] sm:$0xff]
    %v101 = vld [vmem:[%s3 + $0x70] sm:$0xff]
    %v102 = vld [vmem:[%s3 + $0x78] sm:$0xff]
    %v103 = vld [vmem:[%s3 + $0x80] sm:$0xff]
    %v104 = vld [vmem:[%s3 + $0x88] sm:$0xff]
    %v105 = vld [vmem:[%s3 + $0x90] sm:$0xff]
    %v106 = vld [vmem:[%s3 + $0x98] sm:$0xff]
    %v107 = vld [vmem:[%s3 + $0xa0] sm:$0xff]
    %v108 = vld [vmem:[%s3 + $0xa8] sm:$0xff]
    %v109 = vld [vmem:[%s3 + $0xb0] sm:$0xff]
    %v110 = vld [vmem:[%s3 + $0xb8] sm:$0xff]
    %v111 = vld [vmem:[%s3 + $0xc0] sm:$0xff]
    %v112 = vld [vmem:[%s3 + $0xc8] sm:$0xff]
    %v113 = vld [vmem:[%s3 + $0xd0] sm:$0xff]
    %v114 = vld [vmem:[%s3 + $0xd8] sm:$0xff]
    %v115 = vld [vmem:[%s3 + $0xe0] sm:$0xff]
    %v116 = vld [vmem:[%s3 + $0xe8] sm:$0xff]
    %v117 = vld [vmem:[%s3 + $0xf0] sm:$0xff]
    %v118 = vld [vmem:[%s3 + $0xf8] sm:$0xff]
    %120 = vset.pattern.permute.xlu0 0
    %121 = vperm.xlu0 %120, %v87
    %v122 = vpop.permute.xlu0 %121
    %125 = vset.pattern.permute.xlu0 0
    %126 = vperm.xlu0 %125, %v88
    %v127 = vpop.permute.xlu0 %126
    %130 = vset.pattern.permute.xlu0 0
    %131 = vperm.xlu0 %130, %v89
    %v132 = vpop.permute.xlu0 %131
    %135 = vset.pattern.permute.xlu0 0
    %136 = vperm.xlu0 %135, %v90
    %v137 = vpop.permute.xlu0 %136
    %140 = vset.pattern.permute.xlu0 0
    %141 = vperm.xlu0 %140, %v91
    %v142 = vpop.permute.xlu0 %141
    %145 = vset.pattern.permute.xlu0 0
    %146 = vperm.xlu0 %145, %v92
    %v147 = vpop.permute.xlu0 %146
    %150 = vset.pattern.permute.xlu0 0
    %151 = vperm.xlu0 %150, %v93
    %v152 = vpop.permute.xlu0 %151
    %155 = vset.pattern.permute.xlu0 0
    %156 = vperm.xlu0 %155, %v94
    %v157 = vpop.permute.xlu0 %156
    %160 = vset.pattern.permute.xlu0 0
    %161 = vperm.xlu0 %160, %v95
    %v162 = vpop.permute.xlu0 %161
    %165 = vset.pattern.permute.xlu0 0
    %166 = vperm.xlu0 %165, %v96
    %v167 = vpop.permute.xlu0 %166
    %170 = vset.pattern.permute.xlu0 0
    %171 = vperm.xlu0 %170, %v97
    %v172 = vpop.permute.xlu0 %171
    %175 = vset.pattern.permute.xlu0 0
    %176 = vperm.xlu0 %175, %v98
    %v177 = vpop.permute.xlu0 %176
    %180 = vset.pattern.permute.xlu0 0
    %181 = vperm.xlu0 %180, %v99
    %v182 = vpop.permute.xlu0 %181
    %185 = vset.pattern.permute.xlu0 0
    %186 = vperm.xlu0 %185, %v100
    %v187 = vpop.permute.xlu0 %186
    %190 = vset.pattern.permute.xlu0 0
    %191 = vperm.xlu0 %190, %v101
    %v192 = vpop.permute.xlu0 %191
    %195 = vset.pattern.permute.xlu0 0
    %196 = vperm.xlu0 %195, %v102
    %v197 = vpop.permute.xlu0 %196
    %200 = vset.pattern.permute.xlu0 0
    %201 = vperm.xlu0 %200, %v103
    %v202 = vpop.permute.xlu0 %201
    %205 = vset.pattern.permute.xlu0 0
    %206 = vperm.xlu0 %205, %v104
    %v207 = vpop.permute.xlu0 %206
    %210 = vset.pattern.permute.xlu0 0
    %211 = vperm.xlu0 %210, %v105
    %v212 = vpop.permute.xlu0 %211
    %215 = vset.pattern.permute.xlu0 0
    %216 = vperm.xlu0 %215, %v106
    %v217 = vpop.permute.xlu0 %216
    %220 = vset.pattern.permute.xlu0 0
    %221 = vperm.xlu0 %220, %v107
    %v222 = vpop.permute.xlu0 %221
    %225 = vset.pattern.permute.xlu0 0
    %226 = vperm.xlu0 %225, %v108
    %v227 = vpop.permute.xlu0 %226
    %230 = vset.pattern.permute.xlu0 0
    %231 = vperm.xlu0 %230, %v109
    %v232 = vpop.permute.xlu0 %231
    %235 = vset.pattern.permute.xlu0 0
    %236 = vperm.xlu0 %235, %v110
    %v237 = vpop.permute.xlu0 %236
    %240 = vset.pattern.permute.xlu0 0
    %241 = vperm.xlu0 %240, %v111
    %v242 = vpop.permute.xlu0 %241
    %245 = vset.pattern.permute.xlu0 0
    %246 = vperm.xlu0 %245, %v112
    %v247 = vpop.permute.xlu0 %246
    %250 = vset.pattern.permute.xlu0 0
    %251 = vperm.xlu0 %250, %v113
    %v252 = vpop.permute.xlu0 %251
    %255 = vset.pattern.permute.xlu0 0
    %256 = vperm.xlu0 %255, %v114
    %v257 = vpop.permute.xlu0 %256
    %260 = vset.pattern.permute.xlu0 0
    %261 = vperm.xlu0 %260, %v115
    %v262 = vpop.permute.xlu0 %261
    %265 = vset.pattern.permute.xlu0 0
    %266 = vperm.xlu0 %265, %v116
    %v267 = vpop.permute.xlu0 %266
    %270 = vset.pattern.permute.xlu0 0
    %271 = vperm.xlu0 %270, %v117
    %v272 = vpop.permute.xlu0 %271
    %275 = vset.pattern.permute.xlu0 0
    %276 = vperm.xlu0 %275, %v118
    %v277 = vpop.permute.xlu0 %276
    %v311 = vunpack.c.l.b16 %v55
    %v312 = vunpack.c.l.b16 %v56
    %v313 = vunpack.c.l.b16 %v57
    %v314 = vunpack.c.l.b16 %v58
    %v315 = vunpack.c.l.b16 %v59
    %v316 = vunpack.c.l.b16 %v60
    %v317 = vunpack.c.l.b16 %v61
    %v318 = vunpack.c.l.b16 %v62
    %v319 = vunpack.c.l.b16 %v63
    %v320 = vunpack.c.l.b16 %v64
    %v321 = vunpack.c.l.b16 %v65
    %v322 = vunpack.c.l.b16 %v66
    %v323 = vunpack.c.l.b16 %v67
    %v324 = vunpack.c.l.b16 %v68
    %v325 = vunpack.c.l.b16 %v69
    %v326 = vunpack.c.l.b16 %v70
    %v327 = vunpack.c.l.b16 %v71
    %v328 = vunpack.c.l.b16 %v72
    %v329 = vunpack.c.l.b16 %v73
    %v330 = vunpack.c.l.b16 %v74
    %v331 = vunpack.c.l.b16 %v75
    %v332 = vunpack.c.l.b16 %v76
    %v333 = vunpack.c.l.b16 %v77
    %v334 = vunpack.c.l.b16 %v78
    %v335 = vunpack.c.l.b16 %v79
    %v336 = vunpack.c.l.b16 %v80
    %v337 = vunpack.c.l.b16 %v81
    %v338 = vunpack.c.l.b16 %v82
    %v339 = vunpack.c.l.b16 %v83
    %v340 = vunpack.c.l.b16 %v84
    %v341 = vunpack.c.l.b16 %v85
    %v342 = vunpack.c.l.b16 %v86
    %v343 = vpack.c.b16 %v312, %v311
    %v344 = vpack.c.b16 %v314, %v313
    %v345 = vpack.c.b16 %v316, %v315
    %v346 = vpack.c.b16 %v318, %v317
    %v347 = vpack.c.b16 %v320, %v319
    %v348 = vpack.c.b16 %v322, %v321
    %v349 = vpack.c.b16 %v324, %v323
    %v350 = vpack.c.b16 %v326, %v325
    %v351 = vpack.c.b16 %v328, %v327
    %v352 = vpack.c.b16 %v330, %v329
    %v353 = vpack.c.b16 %v332, %v331
    %v354 = vpack.c.b16 %v334, %v333
    %v355 = vpack.c.b16 %v336, %v335
    %v356 = vpack.c.b16 %v338, %v337
    %v357 = vpack.c.b16 %v340, %v339
    %v358 = vpack.c.b16 %v342, %v341
    %vm359 = vcmask 261120
    %v361 = vsel %vm359, %v343, 0
    %v364 = vsel %vm359, %v344, 0
    %v367 = vsel %vm359, %v345, 0
    %v370 = vsel %vm359, %v346, 0
    %v373 = vsel %vm359, %v347, 0
    %v376 = vsel %vm359, %v348, 0
    %v379 = vsel %vm359, %v349, 0
    %v382 = vsel %vm359, %v350, 0
    %v385 = vsel %vm359, %v351, 0
    %v388 = vsel %vm359, %v352, 0
    %v391 = vsel %vm359, %v353, 0
    %v394 = vsel %vm359, %v354, 0
    %v397 = vsel %vm359, %v355, 0
    %v400 = vsel %vm359, %v356, 0
    %v403 = vsel %vm359, %v357, 0
    %v406 = vsel %vm359, %v358, 0
    %v409 = vsel %vm359, %v54, 0
    %411 = vmatpush.bf16.xpose.msra.mxu0 0
    %412 = vmatpush.bf16.xpose.msra.mxu0 0
    %413 = vmatpush.bf16.xpose.msra.mxu0 0
    %414 = vmatpush.bf16.xpose.msra.mxu0 0
    %415 = vmatpush.bf16.xpose.msra.mxu0 0
    %416 = vmatpush.bf16.xpose.msra.mxu0 0
    %417 = vmatpush.bf16.xpose.msra.mxu0 0
    %418 = vmatpush.bf16.xpose.msra.mxu0 %v409
    %419 = vmatmul.bf16.gmra.mxu0 %v361
    %v420 = vpop.f32.mrf.mxu0
    %v421 = vadd.f32 %v122, %v420
    %v422 = vpop.f32.mrf.mxu0
    %v423 = vadd.f32 %v127, %v422
    %424 = vmatmul.bf16.gmra.mxu0 %v364
    %v425 = vpop.f32.mrf.mxu0
    %v426 = vadd.f32 %v132, %v425
    %v427 = vpop.f32.mrf.mxu0
    %v428 = vadd.f32 %v137, %v427
    %429 = vmatmul.bf16.gmra.mxu0 %v367
    %v430 = vpop.f32.mrf.mxu0
    %v431 = vadd.f32 %v142, %v430
    %v432 = vpop.f32.mrf.mxu0
    %v433 = vadd.f32 %v147, %v432
    %434 = vmatmul.bf16.gmra.mxu0 %v370
    %v435 = vpop.f32.mrf.mxu0
    %v436 = vadd.f32 %v152, %v435
    %v437 = vpop.f32.mrf.mxu0
    %v438 = vadd.f32 %v157, %v437
    %439 = vmatmul.bf16.gmra.mxu0 %v373
    %v440 = vpop.f32.mrf.mxu0
    %v441 = vadd.f32 %v162, %v440
    %v442 = vpop.f32.mrf.mxu0
    %v443 = vadd.f32 %v167, %v442
    %444 = vmatmul.bf16.gmra.mxu0 %v376
    %v445 = vpop.f32.mrf.mxu0
    %v446 = vadd.f32 %v172, %v445
    %v447 = vpop.f32.mrf.mxu0
    %v448 = vadd.f32 %v177, %v447
    %449 = vmatmul.bf16.gmra.mxu0 %v379
    %v450 = vpop.f32.mrf.mxu0
    %v451 = vadd.f32 %v182, %v450
    %v452 = vpop.f32.mrf.mxu0
    %v453 = vadd.f32 %v187, %v452
    %454 = vmatmul.bf16.gmra.mxu0 %v382
    %v455 = vpop.f32.mrf.mxu0
    %v456 = vadd.f32 %v192, %v455
    %v457 = vpop.f32.mrf.mxu0
    %v458 = vadd.f32 %v197, %v457
    %459 = vmatmul.bf16.gmra.mxu0 %v385
    %v460 = vpop.f32.mrf.mxu0
    %v461 = vadd.f32 %v202, %v460
    %v462 = vpop.f32.mrf.mxu0
    %v463 = vadd.f32 %v207, %v462
    %464 = vmatmul.bf16.gmra.mxu0 %v388
    %v465 = vpop.f32.mrf.mxu0
    %v466 = vadd.f32 %v212, %v465
    %v467 = vpop.f32.mrf.mxu0
    %v468 = vadd.f32 %v217, %v467
    %469 = vmatmul.bf16.gmra.mxu0 %v391
    %v470 = vpop.f32.mrf.mxu0
    %v471 = vadd.f32 %v222, %v470
    %v472 = vpop.f32.mrf.mxu0
    %v473 = vadd.f32 %v227, %v472
    %474 = vmatmul.bf16.gmra.mxu0 %v394
    %v475 = vpop.f32.mrf.mxu0
    %v476 = vadd.f32 %v232, %v475
    %v477 = vpop.f32.mrf.mxu0
    %v478 = vadd.f32 %v237, %v477
    %479 = vmatmul.bf16.gmra.mxu0 %v397
    %v480 = vpop.f32.mrf.mxu0
    %v481 = vadd.f32 %v242, %v480
    %v482 = vpop.f32.mrf.mxu0
    %v483 = vadd.f32 %v247, %v482
    %484 = vmatmul.bf16.gmra.mxu0 %v400
    %v485 = vpop.f32.mrf.mxu0
    %v486 = vadd.f32 %v252, %v485
    %v487 = vpop.f32.mrf.mxu0
    %v488 = vadd.f32 %v257, %v487
    %489 = vmatmul.bf16.gmra.mxu0 %v403
    %v490 = vpop.f32.mrf.mxu0
    %v491 = vadd.f32 %v262, %v490
    %v492 = vpop.f32.mrf.mxu0
    %v493 = vadd.f32 %v267, %v492
    %494 = vmatmul.bf16.gmra.mxu0 %v406
    %v495 = vpop.f32.mrf.mxu0
    %v496 = vadd.f32 %v272, %v495
    %v497 = vpop.f32.mrf.mxu0
    %v498 = vadd.f32 %v277, %v497
    %499 = vdwg.mxu0
    %vm500 = vcmp.gt.f32.partialorder %v421, 0.0
    %vm501 = vcmp.gt.f32.partialorder %v423, 0.0
    %vm502 = vcmp.gt.f32.partialorder %v426, 0.0
    %vm503 = vcmp.gt.f32.partialorder %v428, 0.0
    %vm504 = vcmp.gt.f32.partialorder %v431, 0.0
    %vm505 = vcmp.gt.f32.partialorder %v433, 0.0
    %vm506 = vcmp.gt.f32.partialorder %v436, 0.0
    %vm507 = vcmp.gt.f32.partialorder %v438, 0.0
    %vm508 = vcmp.gt.f32.partialorder %v441, 0.0
    %vm509 = vcmp.gt.f32.partialorder %v443, 0.0
    %vm510 = vcmp.gt.f32.partialorder %v446, 0.0
    %vm511 = vcmp.gt.f32.partialorder %v448, 0.0
    %vm512 = vcmp.gt.f32.partialorder %v451, 0.0
    %vm513 = vcmp.gt.f32.partialorder %v453, 0.0
    %vm514 = vcmp.gt.f32.partialorder %v456, 0.0
    %vm515 = vcmp.gt.f32.partialorder %v458, 0.0
    %vm516 = vcmp.gt.f32.partialorder %v461, 0.0
    %vm517 = vcmp.gt.f32.partialorder %v463, 0.0
    %vm518 = vcmp.gt.f32.partialorder %v466, 0.0
    %vm519 = vcmp.gt.f32.partialorder %v468, 0.0
    %vm520 = vcmp.gt.f32.partialorder %v471, 0.0
    %vm521 = vcmp.gt.f32.partialorder %v473, 0.0
    %vm522 = vcmp.gt.f32.partialorder %v476, 0.0
    %vm523 = vcmp.gt.f32.partialorder %v478, 0.0
    %vm524 = vcmp.gt.f32.partialorder %v481, 0.0
    %vm525 = vcmp.gt.f32.partialorder %v483, 0.0
    %vm526 = vcmp.gt.f32.partialorder %v486, 0.0
    %vm527 = vcmp.gt.f32.partialorder %v488, 0.0
    %vm528 = vcmp.gt.f32.partialorder %v491, 0.0
    %vm529 = vcmp.gt.f32.partialorder %v493, 0.0
    %vm530 = vcmp.gt.f32.partialorder %v496, 0.0
    %vm531 = vcmp.gt.f32.partialorder %v498, 0.0
    %v532 = vstv %s49
    %v533 = vmul.f32 %v532, %v421
    %v534 = vmul.f32 %v532, %v423
    %v535 = vmul.f32 %v532, %v426
    %v536 = vmul.f32 %v532, %v428
    %v537 = vmul.f32 %v532, %v431
    %v538 = vmul.f32 %v532, %v433
    %v539 = vmul.f32 %v532, %v436
    %v540 = vmul.f32 %v532, %v438
    %v541 = vmul.f32 %v532, %v441
    %v542 = vmul.f32 %v532, %v443
    %v543 = vmul.f32 %v532, %v446
    %v544 = vmul.f32 %v532, %v448
    %v545 = vmul.f32 %v532, %v451
    %v546 = vmul.f32 %v532, %v453
    %v547 = vmul.f32 %v532, %v456
    %v548 = vmul.f32 %v532, %v458
    %v549 = vmul.f32 %v532, %v461
    %v550 = vmul.f32 %v532, %v463
    %v551 = vmul.f32 %v532, %v466
    %v552 = vmul.f32 %v532, %v468
    %v553 = vmul.f32 %v532, %v471
    %v554 = vmul.f32 %v532, %v473
    %v555 = vmul.f32 %v532, %v476
    %v556 = vmul.f32 %v532, %v478
    %v557 = vmul.f32 %v532, %v481
    %v558 = vmul.f32 %v532, %v483
    %v559 = vmul.f32 %v532, %v486
    %v560 = vmul.f32 %v532, %v488
    %v561 = vmul.f32 %v532, %v491
    %v562 = vmul.f32 %v532, %v493
    %v563 = vmul.f32 %v532, %v496
    %v564 = vmul.f32 %v532, %v498
    %v565 = vsel %vm500, %v421, %v533
    %v566 = vsel %vm501, %v423, %v534
    %v567 = vsel %vm502, %v426, %v535
    %v568 = vsel %vm503, %v428, %v536
    %v569 = vsel %vm504, %v431, %v537
    %v570 = vsel %vm505, %v433, %v538
    %v571 = vsel %vm506, %v436, %v539
    %v572 = vsel %vm507, %v438, %v540
    %v573 = vsel %vm508, %v441, %v541
    %v574 = vsel %vm509, %v443, %v542
    %v575 = vsel %vm510, %v446, %v543
    %v576 = vsel %vm511, %v448, %v544
    %v577 = vsel %vm512, %v451, %v545
    %v578 = vsel %vm513, %v453, %v546
    %v579 = vsel %vm514, %v456, %v547
    %v580 = vsel %vm515, %v458, %v548
    %v581 = vsel %vm516, %v461, %v549
    %v582 = vsel %vm517, %v463, %v550
    %v583 = vsel %vm518, %v466, %v551
    %v584 = vsel %vm519, %v468, %v552
    %v585 = vsel %vm520, %v471, %v553
    %v586 = vsel %vm521, %v473, %v554
    %v587 = vsel %vm522, %v476, %v555
    %v588 = vsel %vm523, %v478, %v556
    %v589 = vsel %vm524, %v481, %v557
    %v590 = vsel %vm525, %v483, %v558
    %v591 = vsel %vm526, %v486, %v559
    %v592 = vsel %vm527, %v488, %v560
    %v593 = vsel %vm528, %v491, %v561
    %v594 = vsel %vm529, %v493, %v562
    %v595 = vsel %vm530, %v496, %v563
    %v596 = vsel %vm531, %v498, %v564
    %v597 = vpack.c.bf16 %v566, %v565
    %v598 = vpack.c.bf16 %v568, %v567
    %v599 = vpack.c.bf16 %v570, %v569
    %v600 = vpack.c.bf16 %v572, %v571
    %v601 = vpack.c.bf16 %v574, %v573
    %v602 = vpack.c.bf16 %v576, %v575
    %v603 = vpack.c.bf16 %v578, %v577
    %v604 = vpack.c.bf16 %v580, %v579
    %v605 = vpack.c.bf16 %v582, %v581
    %v606 = vpack.c.bf16 %v584, %v583
    %v607 = vpack.c.bf16 %v586, %v585
    %v608 = vpack.c.bf16 %v588, %v587
    %v609 = vpack.c.bf16 %v590, %v589
    %v610 = vpack.c.bf16 %v592, %v591
    %v611 = vpack.c.bf16 %v594, %v593
    %v612 = vpack.c.bf16 %v596, %v595
    %v613 = vld [vmem:[%s4] sm:$0xff]
    %v614 = vld [vmem:[%s4 + $0x8] sm:$0xff]
    %v615 = vld [vmem:[%s4 + $0x10] sm:$0xff]
    %v616 = vld [vmem:[%s4 + $0x18] sm:$0xff]
    %v617 = vld [vmem:[%s4 + $0x20] sm:$0xff]
    %v618 = vld [vmem:[%s4 + $0x28] sm:$0xff]
    %v619 = vld [vmem:[%s4 + $0x30] sm:$0xff]
    %v620 = vld [vmem:[%s4 + $0x38] sm:$0xff]
    %v621 = vld [vmem:[%s4 + $0x40] sm:$0xff]
    %v622 = vld [vmem:[%s4 + $0x48] sm:$0xff]
    %v623 = vld [vmem:[%s4 + $0x50] sm:$0xff]
    %v624 = vld [vmem:[%s4 + $0x58] sm:$0xff]
    %v625 = vld [vmem:[%s4 + $0x60] sm:$0xff]
    %v626 = vld [vmem:[%s4 + $0x68] sm:$0xff]
    %v627 = vld [vmem:[%s4 + $0x70] sm:$0xff]
    %v628 = vld [vmem:[%s4 + $0x78] sm:$0xff]
    %v629 = vld [vmem:[%s5] sm:$0xff]
    %v630 = vld [vmem:[%s5 + $0x8] sm:$0xff]
    %v631 = vld [vmem:[%s5 + $0x10] sm:$0xff]
    %v632 = vld [vmem:[%s5 + $0x18] sm:$0xff]
    %v633 = vld [vmem:[%s5 + $0x20] sm:$0xff]
    %v634 = vld [vmem:[%s5 + $0x28] sm:$0xff]
    %v635 = vld [vmem:[%s5 + $0x30] sm:$0xff]
    %v636 = vld [vmem:[%s5 + $0x38] sm:$0xff]
    %v637 = vld [vmem:[%s5 + $0x40] sm:$0xff]
    %v638 = vld [vmem:[%s5 + $0x48] sm:$0xff]
    %v639 = vld [vmem:[%s5 + $0x50] sm:$0xff]
    %v640 = vld [vmem:[%s5 + $0x58] sm:$0xff]
    %v641 = vld [vmem:[%s5 + $0x60] sm:$0xff]
    %v642 = vld [vmem:[%s5 + $0x68] sm:$0xff]
    %v643 = vld [vmem:[%s5 + $0x70] sm:$0xff]
    %v644 = vld [vmem:[%s5 + $0x78] sm:$0xff]
    %646 = vset.pattern.permute.xlu0 0
    %647 = vperm.xlu0 %646, %v629
    %v648 = vpop.permute.xlu0 %647
    %651 = vset.pattern.permute.xlu0 0
    %652 = vperm.xlu0 %651, %v630
    %v653 = vpop.permute.xlu0 %652
    %656 = vset.pattern.permute.xlu0 0
    %657 = vperm.xlu0 %656, %v631
    %v658 = vpop.permute.xlu0 %657
    %661 = vset.pattern.permute.xlu0 0
    %662 = vperm.xlu0 %661, %v632
    %v663 = vpop.permute.xlu0 %662
    %666 = vset.pattern.permute.xlu0 0
    %667 = vperm.xlu0 %666, %v633
    %v668 = vpop.permute.xlu0 %667
    %671 = vset.pattern.permute.xlu0 0
    %672 = vperm.xlu0 %671, %v634
    %v673 = vpop.permute.xlu0 %672
    %676 = vset.pattern.permute.xlu0 0
    %677 = vperm.xlu0 %676, %v635
    %v678 = vpop.permute.xlu0 %677
    %681 = vset.pattern.permute.xlu0 0
    %682 = vperm.xlu0 %681, %v636
    %v683 = vpop.permute.xlu0 %682
    %686 = vset.pattern.permute.xlu0 0
    %687 = vperm.xlu0 %686, %v637
    %v688 = vpop.permute.xlu0 %687
    %691 = vset.pattern.permute.xlu0 0
    %692 = vperm.xlu0 %691, %v638
    %v693 = vpop.permute.xlu0 %692
    %696 = vset.pattern.permute.xlu0 0
    %697 = vperm.xlu0 %696, %v639
    %v698 = vpop.permute.xlu0 %697
    %701 = vset.pattern.permute.xlu0 0
    %702 = vperm.xlu0 %701, %v640
    %v703 = vpop.permute.xlu0 %702
    %706 = vset.pattern.permute.xlu0 0
    %707 = vperm.xlu0 %706, %v641
    %v708 = vpop.permute.xlu0 %707
    %711 = vset.pattern.permute.xlu0 0
    %712 = vperm.xlu0 %711, %v642
    %v713 = vpop.permute.xlu0 %712
    %716 = vset.pattern.permute.xlu0 0
    %717 = vperm.xlu0 %716, %v643
    %v718 = vpop.permute.xlu0 %717
    %721 = vset.pattern.permute.xlu0 0
    %722 = vperm.xlu0 %721, %v644
    %v723 = vpop.permute.xlu0 %722
    %v741 = vunpack.c.l.b16 %v613
    %v742 = vunpack.c.h.b16 %v613
    %v743 = vunpack.c.l.b16 %v614
    %v744 = vunpack.c.h.b16 %v614
    %v745 = vunpack.c.l.b16 %v615
    %v746 = vunpack.c.h.b16 %v615
    %v747 = vunpack.c.l.b16 %v616
    %v748 = vunpack.c.h.b16 %v616
    %v749 = vunpack.c.l.b16 %v617
    %v750 = vunpack.c.h.b16 %v617
    %v751 = vunpack.c.l.b16 %v618
    %v752 = vunpack.c.h.b16 %v618
    %v753 = vunpack.c.l.b16 %v619
    %v754 = vunpack.c.h.b16 %v619
    %v755 = vunpack.c.l.b16 %v620
    %v756 = vunpack.c.h.b16 %v620
    %v757 = vunpack.c.l.b16 %v621
    %v758 = vunpack.c.h.b16 %v621
    %v759 = vunpack.c.l.b16 %v622
    %v760 = vunpack.c.h.b16 %v622
    %v761 = vunpack.c.l.b16 %v623
    %v762 = vunpack.c.h.b16 %v623
    %v763 = vunpack.c.l.b16 %v624
    %v764 = vunpack.c.h.b16 %v624
    %v765 = vunpack.c.l.b16 %v625
    %v766 = vunpack.c.h.b16 %v625
    %v767 = vunpack.c.l.b16 %v626
    %v768 = vunpack.c.h.b16 %v626
    %v769 = vunpack.c.l.b16 %v627
    %v770 = vunpack.c.h.b16 %v627
    %v771 = vunpack.c.l.b16 %v628
    %v772 = vunpack.c.h.b16 %v628
    %v773 = vpack.c.b16 %v743, %v741
    %v774 = vpack.c.b16 %v744, %v742
    %v775 = vpack.c.b16 %v747, %v745
    %v776 = vpack.c.b16 %v748, %v746
    %v777 = vpack.c.b16 %v751, %v749
    %v778 = vpack.c.b16 %v752, %v750
    %v779 = vpack.c.b16 %v755, %v753
    %v780 = vpack.c.b16 %v756, %v754
    %v781 = vpack.c.b16 %v759, %v757
    %v782 = vpack.c.b16 %v760, %v758
    %v783 = vpack.c.b16 %v763, %v761
    %v784 = vpack.c.b16 %v764, %v762
    %v785 = vpack.c.b16 %v767, %v765
    %v786 = vpack.c.b16 %v768, %v766
    %v787 = vpack.c.b16 %v771, %v769
    %v788 = vpack.c.b16 %v772, %v770
    %805 = vmatpush.bf16.msra.mxu0 %v604
    %806 = vmatpush.bf16.msra.mxu0 %v603
    %807 = vmatpush.bf16.msra.mxu0 %v602
    %808 = vmatpush.bf16.msra.mxu0 %v601
    %809 = vmatpush.bf16.msra.mxu0 %v600
    %810 = vmatpush.bf16.msra.mxu0 %v599
    %811 = vmatpush.bf16.msra.mxu0 %v598
    %812 = vmatpush.bf16.msra.mxu0 %v597
    %813 = vmatmul.bf16.gmra.mxu0 %v773
    %v814 = vpop.f32.mrf.mxu0
    %v815 = vadd.f32 %v648, %v814
    %v816 = vpop.f32.mrf.mxu0
    %v817 = vadd.f32 %v653, %v816
    %818 = vmatmul.bf16.gmra.mxu0 %v775
    %v819 = vpop.f32.mrf.mxu0
    %v820 = vadd.f32 %v658, %v819
    %v821 = vpop.f32.mrf.mxu0
    %v822 = vadd.f32 %v663, %v821
    %823 = vmatmul.bf16.gmra.mxu0 %v777
    %v824 = vpop.f32.mrf.mxu0
    %v825 = vadd.f32 %v668, %v824
    %v826 = vpop.f32.mrf.mxu0
    %v827 = vadd.f32 %v673, %v826
    %828 = vmatmul.bf16.gmra.mxu0 %v779
    %v829 = vpop.f32.mrf.mxu0
    %v830 = vadd.f32 %v678, %v829
    %v831 = vpop.f32.mrf.mxu0
    %v832 = vadd.f32 %v683, %v831
    %833 = vmatmul.bf16.gmra.mxu0 %v781
    %v834 = vpop.f32.mrf.mxu0
    %v835 = vadd.f32 %v688, %v834
    %v836 = vpop.f32.mrf.mxu0
    %v837 = vadd.f32 %v693, %v836
    %838 = vmatmul.bf16.gmra.mxu0 %v783
    %v839 = vpop.f32.mrf.mxu0
    %v840 = vadd.f32 %v698, %v839
    %v841 = vpop.f32.mrf.mxu0
    %v842 = vadd.f32 %v703, %v841
    %843 = vmatmul.bf16.gmra.mxu0 %v785
    %v844 = vpop.f32.mrf.mxu0
    %v845 = vadd.f32 %v708, %v844
    %v846 = vpop.f32.mrf.mxu0
    %v847 = vadd.f32 %v713, %v846
    %848 = vmatmul.bf16.gmra.mxu0 %v787
    %v849 = vpop.f32.mrf.mxu0
    %v850 = vadd.f32 %v718, %v849
    %v851 = vpop.f32.mrf.mxu0
    %v852 = vadd.f32 %v723, %v851
    %853 = vdwg.mxu0
    %854 = vmatpush.bf16.msra.mxu0 %v612
    %855 = vmatpush.bf16.msra.mxu0 %v611
    %856 = vmatpush.bf16.msra.mxu0 %v610
    %857 = vmatpush.bf16.msra.mxu0 %v609
    %858 = vmatpush.bf16.msra.mxu0 %v608
    %859 = vmatpush.bf16.msra.mxu0 %v607
    %860 = vmatpush.bf16.msra.mxu0 %v606
    %861 = vmatpush.bf16.msra.mxu0 %v605
    %862 = vmatmul.bf16.gmra.mxu0 %v774
    %v863 = vpop.f32.mrf.mxu0
    %v864 = vadd.f32 %v815, %v863
    %v865 = vpop.f32.mrf.mxu0
    %v866 = vadd.f32 %v817, %v865
    %867 = vmatmul.bf16.gmra.mxu0 %v776
    %v868 = vpop.f32.mrf.mxu0
    %v869 = vadd.f32 %v820, %v868
    %v870 = vpop.f32.mrf.mxu0
    %v871 = vadd.f32 %v822, %v870
    %872 = vmatmul.bf16.gmra.mxu0 %v778
    %v873 = vpop.f32.mrf.mxu0
    %v874 = vadd.f32 %v825, %v873
    %v875 = vpop.f32.mrf.mxu0
    %v876 = vadd.f32 %v827, %v875
    %877 = vmatmul.bf16.gmra.mxu0 %v780
    %v878 = vpop.f32.mrf.mxu0
    %v879 = vadd.f32 %v830, %v878
    %v880 = vpop.f32.mrf.mxu0
    %v881 = vadd.f32 %v832, %v880
    %882 = vmatmul.bf16.gmra.mxu0 %v782
    %v883 = vpop.f32.mrf.mxu0
    %v884 = vadd.f32 %v835, %v883
    %v885 = vpop.f32.mrf.mxu0
    %v886 = vadd.f32 %v837, %v885
    %887 = vmatmul.bf16.gmra.mxu0 %v784
    %v888 = vpop.f32.mrf.mxu0
    %v889 = vadd.f32 %v840, %v888
    %v890 = vpop.f32.mrf.mxu0
    %v891 = vadd.f32 %v842, %v890
    %892 = vmatmul.bf16.gmra.mxu0 %v786
    %v893 = vpop.f32.mrf.mxu0
    %v894 = vadd.f32 %v845, %v893
    %v895 = vpop.f32.mrf.mxu0
    %v896 = vadd.f32 %v847, %v895
    %897 = vmatmul.bf16.gmra.mxu0 %v788
    %v898 = vpop.f32.mrf.mxu0
    %v899 = vadd.f32 %v850, %v898
    %v900 = vpop.f32.mrf.mxu0
    %v901 = vadd.f32 %v852, %v900
    %902 = vdwg.mxu0
    %vm903 = vcmp.gt.f32.partialorder %v864, 0.0
    %vm904 = vcmp.gt.f32.partialorder %v866, 0.0
    %vm905 = vcmp.gt.f32.partialorder %v869, 0.0
    %vm906 = vcmp.gt.f32.partialorder %v871, 0.0
    %vm907 = vcmp.gt.f32.partialorder %v874, 0.0
    %vm908 = vcmp.gt.f32.partialorder %v876, 0.0
    %vm909 = vcmp.gt.f32.partialorder %v879, 0.0
    %vm910 = vcmp.gt.f32.partialorder %v881, 0.0
    %vm911 = vcmp.gt.f32.partialorder %v884, 0.0
    %vm912 = vcmp.gt.f32.partialorder %v886, 0.0
    %vm913 = vcmp.gt.f32.partialorder %v889, 0.0
    %vm914 = vcmp.gt.f32.partialorder %v891, 0.0
    %vm915 = vcmp.gt.f32.partialorder %v894, 0.0
    %vm916 = vcmp.gt.f32.partialorder %v896, 0.0
    %vm917 = vcmp.gt.f32.partialorder %v899, 0.0
    %vm918 = vcmp.gt.f32.partialorder %v901, 0.0
    %v919 = vstv %s50
    %v920 = vmul.f32 %v919, %v864
    %v921 = vmul.f32 %v919, %v866
    %v922 = vmul.f32 %v919, %v869
    %v923 = vmul.f32 %v919, %v871
    %v924 = vmul.f32 %v919, %v874
    %v925 = vmul.f32 %v919, %v876
    %v926 = vmul.f32 %v919, %v879
    %v927 = vmul.f32 %v919, %v881
    %v928 = vmul.f32 %v919, %v884
    %v929 = vmul.f32 %v919, %v886
    %v930 = vmul.f32 %v919, %v889
    %v931 = vmul.f32 %v919, %v891
    %v932 = vmul.f32 %v919, %v894
    %v933 = vmul.f32 %v919, %v896
    %v934 = vmul.f32 %v919, %v899
    %v935 = vmul.f32 %v919, %v901
    %v936 = vsel %vm903, %v864, %v920
    %v937 = vsel %vm904, %v866, %v921
    %v938 = vsel %vm905, %v869, %v922
    %v939 = vsel %vm906, %v871, %v923
    %v940 = vsel %vm907, %v874, %v924
    %v941 = vsel %vm908, %v876, %v925
    %v942 = vsel %vm909, %v879, %v926
    %v943 = vsel %vm910, %v881, %v927
    %v944 = vsel %vm911, %v884, %v928
    %v945 = vsel %vm912, %v886, %v929
    %v946 = vsel %vm913, %v889, %v930
    %v947 = vsel %vm914, %v891, %v931
    %v948 = vsel %vm915, %v894, %v932
    %v949 = vsel %vm916, %v896, %v933
    %v950 = vsel %vm917, %v899, %v934
    %v951 = vsel %vm918, %v901, %v935
    %v952 = vpack.c.bf16 %v937, %v936
    %v953 = vpack.c.bf16 %v939, %v938
    %v954 = vpack.c.bf16 %v941, %v940
    %v955 = vpack.c.bf16 %v943, %v942
    %v956 = vpack.c.bf16 %v945, %v944
    %v957 = vpack.c.bf16 %v947, %v946
    %v958 = vpack.c.bf16 %v949, %v948
    %v959 = vpack.c.bf16 %v951, %v950
    %v960 = vld [vmem:[%s6] sm:$0xf]
    %v961 = vld [vmem:[%s6 + $0x4] sm:$0xf]
    %v962 = vld [vmem:[%s6 + $0x8] sm:$0xf]
    %v963 = vld [vmem:[%s6 + $0xc] sm:$0xf]
    %v964 = vld [vmem:[%s6 + $0x10] sm:$0xf]
    %v965 = vld [vmem:[%s6 + $0x14] sm:$0xf]
    %v966 = vld [vmem:[%s6 + $0x18] sm:$0xf]
    %v967 = vld [vmem:[%s6 + $0x1c] sm:$0xf]
    %v968 = vld [vmem:[%s7] sm:$0xff]
    %v969 = vld [vmem:[%s7 + $0x8] sm:$0xff]
    %v970 = vld [vmem:[%s7 + $0x10] sm:$0xff]
    %v971 = vld [vmem:[%s7 + $0x18] sm:$0xff]
    %v972 = vld [vmem:[%s7 + $0x20] sm:$0xff]
    %v973 = vld [vmem:[%s7 + $0x28] sm:$0xff]
    %v974 = vld [vmem:[%s7 + $0x30] sm:$0xff]
    %v975 = vld [vmem:[%s7 + $0x38] sm:$0xff]
    %977 = vset.pattern.permute.xlu0 0
    %978 = vperm.xlu0 %977, %v968
    %v979 = vpop.permute.xlu0 %978
    %982 = vset.pattern.permute.xlu0 0
    %983 = vperm.xlu0 %982, %v969
    %v984 = vpop.permute.xlu0 %983
    %987 = vset.pattern.permute.xlu0 0
    %988 = vperm.xlu0 %987, %v970
    %v989 = vpop.permute.xlu0 %988
    %992 = vset.pattern.permute.xlu0 0
    %993 = vperm.xlu0 %992, %v971
    %v994 = vpop.permute.xlu0 %993
    %997 = vset.pattern.permute.xlu0 0
    %998 = vperm.xlu0 %997, %v972
    %v999 = vpop.permute.xlu0 %998
    %1002 = vset.pattern.permute.xlu0 0
    %1003 = vperm.xlu0 %1002, %v973
    %v1004 = vpop.permute.xlu0 %1003
    %1007 = vset.pattern.permute.xlu0 0
    %1008 = vperm.xlu0 %1007, %v974
    %v1009 = vpop.permute.xlu0 %1008
    %1012 = vset.pattern.permute.xlu0 0
    %1013 = vperm.xlu0 %1012, %v975
    %v1014 = vpop.permute.xlu0 %1013
    %v1024 = vunpack.c.l.b16 %v960
    %v1025 = vunpack.c.l.b16 %v961
    %v1026 = vunpack.c.l.b16 %v962
    %v1027 = vunpack.c.l.b16 %v963
    %v1028 = vunpack.c.l.b16 %v964
    %v1029 = vunpack.c.l.b16 %v965
    %v1030 = vunpack.c.l.b16 %v966
    %v1031 = vunpack.c.l.b16 %v967
    %v1032 = vpack.c.b16 %v1025, %v1024
    %v1033 = vpack.c.b16 %v1027, %v1026
    %v1034 = vpack.c.b16 %v1029, %v1028
    %v1035 = vpack.c.b16 %v1031, %v1030
    %1040 = vmatpush.bf16.msra.mxu0 %v959
    %1041 = vmatpush.bf16.msra.mxu0 %v958
    %1042 = vmatpush.bf16.msra.mxu0 %v957
    %1043 = vmatpush.bf16.msra.mxu0 %v956
    %1044 = vmatpush.bf16.msra.mxu0 %v955
    %1045 = vmatpush.bf16.msra.mxu0 %v954
    %1046 = vmatpush.bf16.msra.mxu0 %v953
    %1047 = vmatpush.bf16.msra.mxu0 %v952
    %1048 = vmatmul.bf16.gmra.mxu0 %v1032
    %v1049 = vpop.f32.mrf.mxu0
    %v1050 = vadd.f32 %v979, %v1049
    %v1051 = vpop.f32.mrf.mxu0
    %v1052 = vadd.f32 %v984, %v1051
    %1053 = vmatmul.bf16.gmra.mxu0 %v1033
    %v1054 = vpop.f32.mrf.mxu0
    %v1055 = vadd.f32 %v989, %v1054
    %v1056 = vpop.f32.mrf.mxu0
    %v1057 = vadd.f32 %v994, %v1056
    %1058 = vmatmul.bf16.gmra.mxu0 %v1034
    %v1059 = vpop.f32.mrf.mxu0
    %v1060 = vadd.f32 %v999, %v1059
    %v1061 = vpop.f32.mrf.mxu0
    %v1062 = vadd.f32 %v1004, %v1061
    %1063 = vmatmul.bf16.gmra.mxu0 %v1035
    %v1064 = vpop.f32.mrf.mxu0
    %v1065 = vadd.f32 %v1009, %v1064
    %v1066 = vpop.f32.mrf.mxu0
    %v1067 = vadd.f32 %v1014, %v1066
    %1068 = vdwg.mxu0
    %vm1069 = vcmp.gt.f32.partialorder %v1050, 0.0
    %vm1070 = vcmp.gt.f32.partialorder %v1052, 0.0
    %vm1071 = vcmp.gt.f32.partialorder %v1055, 0.0
    %vm1072 = vcmp.gt.f32.partialorder %v1057, 0.0
    %vm1073 = vcmp.gt.f32.partialorder %v1060, 0.0
    %vm1074 = vcmp.gt.f32.partialorder %v1062, 0.0
    %vm1075 = vcmp.gt.f32.partialorder %v1065, 0.0
    %vm1076 = vcmp.gt.f32.partialorder %v1067, 0.0
    %v1077 = vstv %s51
    %v1078 = vmul.f32 %v1077, %v1050
    %v1079 = vmul.f32 %v1077, %v1052
    %v1080 = vmul.f32 %v1077, %v1055
    %v1081 = vmul.f32 %v1077, %v1057
    %v1082 = vmul.f32 %v1077, %v1060
    %v1083 = vmul.f32 %v1077, %v1062
    %v1084 = vmul.f32 %v1077, %v1065
    %v1085 = vmul.f32 %v1077, %v1067
    %v1086 = vsel %vm1069, %v1050, %v1078
    %v1087 = vsel %vm1070, %v1052, %v1079
    %v1088 = vsel %vm1071, %v1055, %v1080
    %v1089 = vsel %vm1072, %v1057, %v1081
    %v1090 = vsel %vm1073, %v1060, %v1082
    %v1091 = vsel %vm1074, %v1062, %v1083
    %v1092 = vsel %vm1075, %v1065, %v1084
    %v1093 = vsel %vm1076, %v1067, %v1085
    %v1094 = vpack.c.bf16 %v1087, %v1086
    %v1095 = vpack.c.bf16 %v1089, %v1088
    %v1096 = vpack.c.bf16 %v1091, %v1090
    %v1097 = vpack.c.bf16 %v1093, %v1092
    %v1098 = vld [vmem:[%s8] sm:$0xf]
    %v1099 = vld [vmem:[%s8 + $0x4] sm:$0xf]
    %v1100 = vld [vmem:[%s9] sm:$0xff]
    %v1101 = vld [vmem:[%s9 + $0x8] sm:$0xff]
    %1103 = vset.pattern.permute.xlu0 0
    %1104 = vperm.xlu0 %1103, %v1100
    %v1105 = vpop.permute.xlu0 %1104
    %1108 = vset.pattern.permute.xlu0 0
    %1109 = vperm.xlu0 %1108, %v1101
    %v1110 = vpop.permute.xlu0 %1109
    %v1114 = vunpack.c.l.b16 %v1098
    %v1115 = vunpack.c.l.b16 %v1099
    %v1116 = vpack.c.b16 %v1115, %v1114
    %vm1117 = vcmask 523264
    %v1119 = vsel %vm1117, %v1116, 0
    %1121 = vmatpush.bf16.msra.mxu0 0
    %1122 = vmatpush.bf16.msra.mxu0 0
    %1123 = vmatpush.bf16.msra.mxu0 0
    %1124 = vmatpush.bf16.msra.mxu0 0
    %1125 = vmatpush.bf16.msra.mxu0 %v1097
    %1126 = vmatpush.bf16.msra.mxu0 %v1096
    %1127 = vmatpush.bf16.msra.mxu0 %v1095
    %1128 = vmatpush.bf16.msra.mxu0 %v1094
    %1129 = vmatmul.bf16.gmra.mxu0 %v1119
    %v1130 = vpop.f32.mrf.mxu0
    %v1131 = vadd.f32 %v1105, %v1130
    %v1132 = vpop.f32.mrf.mxu0
    %v1133 = vadd.f32 %v1110, %v1132
    %1134 = vdwg.mxu0
    %v1135 = vtanh.pop %v1131
    %v1136 = vtanh.pop %v1133
    %vm1137 = vcmask 130048
    %1138 = vst.msk [vmem:[%s10] sm:$0xff] %vm1137, %v1135
    %1139 = vst.msk [vmem:[%s10 + $0x8] sm:$0xff] %vm1137, %v1136
    // Predicated region
    $region46: #{mlp_forward.1} parent=1 // pred_check
      _
    $region47: #{mlp_forward.1} parent=1 // pred_check_branch
      %1141 = sbr.rel (0) target = $region49
    $region48: #{mlp_forward.1} parent=1 // pred_region
      _
    $region49: #{mlp_forward.1} parent=1 // pred_fallthru
      _
    // Predicated region
    $region50: #{mlp_forward.1} parent=1 // pred_check
      _
    $region51: #{mlp_forward.1} parent=1 // pred_check_branch
      %1143 = sbr.rel (0) target = $region53
    $region52: #{mlp_forward.1} parent=1 // pred_region
      _
    $region53: #{mlp_forward.1} parent=1 // pred_fallthru
      _
    %1144 = vsyncpa [#allocation3], 1

</llo_original>
